<compile_context>
chip_gen: v6e
topology: v6e:2x2x1
jax: 0.10.0
libtpu: 0.0.40
codegen_flags: <defaults>
</compile_context>

<pallas_src>
import math

import jax
import jax.numpy as jnp
from jax.experimental import pallas as pl
from jax.experimental.pallas import tpu as pltpu


def _round_up(n: int, m: int) -> int:
    return ((n + m - 1) // m) * m


def _mv_encoder_kernel(x_ref, y_ref, wx_ref, wy_ref, b_ref, out_ref):
    """One batch tile: packed = x @ WX + y @ WY + b (all f32 accumulation)."""
    f32 = jnp.float32
    acc = jnp.dot(x_ref[...], wx_ref[...], preferred_element_type=f32)
    acc = acc + jnp.dot(y_ref[...], wy_ref[...], preferred_element_type=f32)
    acc = acc + b_ref[...].astype(f32)
    out_ref[...] = acc.astype(out_ref.dtype)


def fold_params(params):
    """Fold the purely-linear chains into two packed weights + one packed bias.

    Returns (WX [Fx,P], WY [Fy,P], b_packed [1,P], sm, jd, P) with
    P = round_up(2*sm + jd, 128) so the kernel's output slab is lane-dense.
    Packed lane layout: [ x_latent (sm) | y_latent (sm) | joint (jd) | zeros ].
    """
    wx1, bx1 = params["wx1"], params["bx1"]
    wx2, bx2 = params["wx2"], params["bx2"]
    wy1, by1 = params["wy1"], params["by1"]
    wy2, by2 = params["wy2"], params["by2"]
    wj1, bj1 = params["wj1"], params["bj1"]
    wj2, bj2 = params["wj2"], params["bj2"]

    Fx = wx1.shape[0]
    Fy = wy1.shape[0]
    sm = wx2.shape[1]
    jd = wj2.shape[1]

    f32 = jnp.float32
    wx_eff = wx1 @ wx2                      # [Fx, sm]
    bx_eff = bx1 @ wx2 + bx2                # [sm]
    wy_eff = wy1 @ wy2                      # [Fy, sm]
    by_eff = by1 @ wy2 + by2                # [sm]

    wj1x, wj1y = wj1[:sm], wj1[sm:]         # split of the concat axis
    wjx_eff = wj1x @ wj2                    # [sm, jd]
    wjy_eff = wj1y @ wj2                    # [sm, jd]
    bj_eff = bj1 @ wj2 + bj2                # [jd]

    width = 2 * sm + jd
    P = _round_up(width, 128)
    pad = P - width

    WX = jnp.concatenate(
        [wx_eff, jnp.zeros((Fx, sm), f32), wx_eff @ wjx_eff,
         jnp.zeros((Fx, pad), f32)], axis=1)
    WY = jnp.concatenate(
        [jnp.zeros((Fy, sm), f32), wy_eff, wy_eff @ wjy_eff,
         jnp.zeros((Fy, pad), f32)], axis=1)
    b_packed = jnp.concatenate(
        [bx_eff, by_eff, bx_eff @ wjx_eff + by_eff @ wjy_eff + bj_eff,
         jnp.zeros((pad,), f32)]).reshape(1, P)

    return WX, WY, b_packed, sm, jd, P


def multi_view_encoder(x, y, params, *, batch_tile=512):
    """x: [B, Fx], y: [B, Fy]; returns (joint, x_latent, y_latent)."""
    B, Fx = x.shape
    _, Fy = y.shape

    WX, WY, b_packed, sm, jd, P = fold_params(params)

    # Batch tile: multiple of 8 sublanes, capped by batch_tile. Weights/bias
    # stay VMEM-resident (index_map always block 0); x/y/out are tiled & pipelined.
    bt = _round_up(min(batch_tile, B), 8)
    grid = (pl.cdiv(B, bt),)

    in_specs = [
        pl.BlockSpec((bt, Fx), lambda i: (i, 0)),   # x tile
        pl.BlockSpec((bt, Fy), lambda i: (i, 0)),   # y tile
        pl.BlockSpec((Fx, P), lambda i: (0, 0)),    # WX (resident)
        pl.BlockSpec((Fy, P), lambda i: (0, 0)),    # WY (resident)
        pl.BlockSpec((1, P), lambda i: (0, 0)),     # packed bias (resident)
    ]
    out_specs = pl.BlockSpec((bt, P), lambda i: (i, 0))
    out_shape = jax.ShapeDtypeStruct((B, P), jnp.float32)

    flops = 2 * B * (Fx + Fy) * P + 2 * B * P
    bytes_accessed = 4 * (B * Fx + B * Fy + (Fx + Fy + 1) * P + B * P)
    cost = pl.CostEstimate(flops=flops, transcendentals=0,
                           bytes_accessed=bytes_accessed)

    packed = pl.pallas_call(
        _mv_encoder_kernel,
        grid=grid,
        in_specs=in_specs,
        out_specs=out_specs,
        out_shape=out_shape,
        compiler_params=pltpu.CompilerParams(
            dimension_semantics=("parallel",),
        ),
        cost_estimate=cost,
    )(x, y, WX, WY, b_packed)

    x_lat = packed[:, :sm]
    y_lat = packed[:, sm:2 * sm]
    joint = packed[:, 2 * sm:2 * sm + jd]
    return joint, x_lat, y_lat


def init_params(key, in_features_x, in_features_y, sm_latent_dim, joint_latent_dim):
    """Kaiming-normal (fan_in, gain sqrt(2)) weights, zero biases — matches the
    PyTorch init_weights semantics, deterministic from `key`. Weights stored as
    [in, out] (transposed vs nn.Linear) so forward is x @ W + b."""
    def linear(k, fan_in, fan_out):
        std = math.sqrt(2.0 / fan_in)
        w = jax.random.normal(k, (fan_in, fan_out), dtype=jnp.float32) * std
        b = jnp.zeros((fan_out,), dtype=jnp.float32)
        return w, b

    keys = jax.random.split(key, 6)
    p = {}
    p["wx1"], p["bx1"] = linear(keys[0], in_features_x, sm_latent_dim)
    p["wx2"], p["bx2"] = linear(keys[1], sm_latent_dim, sm_latent_dim)
    p["wy1"], p["by1"] = linear(keys[2], in_features_y, sm_latent_dim)
    p["wy2"], p["by2"] = linear(keys[3], sm_latent_dim, sm_latent_dim)
    p["wj1"], p["bj1"] = linear(keys[4], 2 * sm_latent_dim, joint_latent_dim)
    p["wj2"], p["bj2"] = linear(keys[5], joint_latent_dim, joint_latent_dim)
    return p


def reference(x, y, params):
    """Pure-JAX reference mirroring the PyTorch forward exactly (unfused)."""
    xl = (x @ params["wx1"] + params["bx1"]) @ params["wx2"] + params["bx2"]
    yl = (y @ params["wy1"] + params["by1"]) @ params["wy2"] + params["by2"]
    jcat = jnp.concatenate([xl, yl], axis=1)
    joint = (jcat @ params["wj1"] + params["bj1"]) @ params["wj2"] + params["bj2"]
    return joint, xl, yl


if __name__ == "__main__":
    # Small synthetic config (consistent with the module's forward).
    B = 64                    # multiple grid steps with batch_tile=16 below
    in_features_x = 20
    in_features_y = 12
    sm_latent_dim = 32
    joint_latent_dim = 16

    key = jax.random.PRNGKey(0)
    kx, ky, kp = jax.random.split(key, 3)
    x = jax.random.normal(kx, (B, in_features_x), dtype=jnp.float32)
    y = jax.random.normal(ky, (B, in_features_y), dtype=jnp.float32)
    params = init_params(kp, in_features_x, in_features_y,
                         sm_latent_dim, joint_latent_dim)

    # batch_tile=16 exercises the batch grid (4 pipelined steps) at this tiny B;
    # real workloads should use the default (512) or larger.
    joint, x_lat, y_lat = multi_view_encoder(x, y, params, batch_tile=16)
    jax.block_until_ready((joint, x_lat, y_lat))

    # Correctness vs the unfused pure-JAX reference. Weight folding changes
    # f32 accumulation order slightly, hence 1e-4 tolerances.
    j_ref, xl_ref, yl_ref = reference(x, y, params)
    assert jnp.allclose(joint, j_ref, atol=1e-4, rtol=1e-4)
    assert jnp.allclose(x_lat, xl_ref, atol=1e-4, rtol=1e-4)
    assert jnp.allclose(y_lat, yl_ref, atol=1e-4, rtol=1e-4)

    print("KERNEL_OK")
</pallas_src>

<mosaic_0001>
module attributes {stable_mosaic.version = 11 : i64} {
  func.func @_mv_encoder_kernel(%arg0: i32, %arg1: memref<16x20xf32, #tpu.memory_space<vmem>>, %arg2: memref<16x12xf32, #tpu.memory_space<vmem>>, %arg3: memref<20x128xf32, #tpu.memory_space<vmem>>, %arg4: memref<12x128xf32, #tpu.memory_space<vmem>>, %arg5: memref<1x128xf32, #tpu.memory_space<vmem>>, %arg6: memref<16x128xf32, #tpu.memory_space<vmem>>) attributes {dimension_semantics = [#tpu.dimension_semantics<parallel>], iteration_bounds = array<i64: 4>, scalar_prefetch = 0 : i64, scratch_operands = 0 : i64, tpu.core_type = #tpu.core_type<tc>, window_params = [{transform_indices = @transform_0, window_bounds = array<i64: 16, 20>}, {transform_indices = @transform_1, window_bounds = array<i64: 16, 12>}, {pipeline_mode = #tpu.pipeline_mode<synchronous>, transform_indices = @transform_2, window_bounds = array<i64: 20, 128>}, {pipeline_mode = #tpu.pipeline_mode<synchronous>, transform_indices = @transform_3, window_bounds = array<i64: 12, 128>}, {pipeline_mode = #tpu.pipeline_mode<synchronous>, transform_indices = @transform_4, window_bounds = array<i64: 1, 128>}, {transform_indices = @transform_5, window_bounds = array<i64: 16, 128>}]} {
    %c0 = arith.constant 0 : index
    %c0_0 = arith.constant 0 : index
    %0 = vector.load %arg1[%c0, %c0_0] : memref<16x20xf32, #tpu.memory_space<vmem>>, vector<16x20xf32>
    %c0_1 = arith.constant 0 : index
    %c0_2 = arith.constant 0 : index
    %1 = vector.load %arg3[%c0_1, %c0_2] : memref<20x128xf32, #tpu.memory_space<vmem>>, vector<20x128xf32>
    %cst = arith.constant dense<0.000000e+00> : vector<16x128xf32>
    %2 = tpu.matmul %0, %1, %cst {dimension_numbers = #tpu.dot_dimension_numbers<[1], [0], [0], [1], [0, 0, 1, 1], [], []>} : vector<16x20xf32>, vector<20x128xf32>, vector<16x128xf32> -> vector<16x128xf32>
    %c0_3 = arith.constant 0 : index
    %c0_4 = arith.constant 0 : index
    %3 = vector.load %arg2[%c0_3, %c0_4] : memref<16x12xf32, #tpu.memory_space<vmem>>, vector<16x12xf32>
    %c0_5 = arith.constant 0 : index
    %c0_6 = arith.constant 0 : index
    %4 = vector.load %arg4[%c0_5, %c0_6] : memref<12x128xf32, #tpu.memory_space<vmem>>, vector<12x128xf32>
    %cst_7 = arith.constant dense<0.000000e+00> : vector<16x128xf32>
    %5 = tpu.matmul %3, %4, %cst_7 {dimension_numbers = #tpu.dot_dimension_numbers<[1], [0], [0], [1], [0, 0, 1, 1], [], []>} : vector<16x12xf32>, vector<12x128xf32>, vector<16x128xf32> -> vector<16x128xf32>
    %6 = arith.addf %2, %5 : vector<16x128xf32>
    %c0_8 = arith.constant 0 : index
    %c0_9 = arith.constant 0 : index
    %7 = vector.load %arg5[%c0_8, %c0_9] : memref<1x128xf32, #tpu.memory_space<vmem>>, vector<1x128xf32>
    %8 = vector.broadcast %7 : vector<1x128xf32> to vector<16x128xf32>
    %9 = arith.addf %6, %8 : vector<16x128xf32>
    %c0_10 = arith.constant 0 : index
    %c0_11 = arith.constant 0 : index
    %10 = vector.load %arg6[%c0_10, %c0_11] : memref<16x128xf32, #tpu.memory_space<vmem>>, vector<16x128xf32>
    tpu.vector_store %arg6[%c0_10, %c0_11], %9 {strides = array<i32>} : memref<16x128xf32, #tpu.memory_space<vmem>>, vector<16x128xf32>,
    return
  }
  func.func @transform_0(%arg0: i32) -> (i32, i32) {
    %c0_i32 = arith.constant 0 : i32
    %c0_i32_0 = arith.constant 0 : i32
    return %arg0, %c0_i32 : i32, i32
  }
  func.func @transform_1(%arg0: i32) -> (i32, i32) {
    %c0_i32 = arith.constant 0 : i32
    %c0_i32_0 = arith.constant 0 : i32
    return %arg0, %c0_i32 : i32, i32
  }
  func.func @transform_2(%arg0: i32) -> (i32, i32) {
    %c0_i32 = arith.constant 0 : i32
    %c0_i32_0 = arith.constant 0 : i32
    %c0_i32_1 = arith.constant 0 : i32
    return %c0_i32, %c0_i32_0 : i32, i32
  }
  func.func @transform_3(%arg0: i32) -> (i32, i32) {
    %c0_i32 = arith.constant 0 : i32
    %c0_i32_0 = arith.constant 0 : i32
    %c0_i32_1 = arith.constant 0 : i32
    return %c0_i32, %c0_i32_0 : i32, i32
  }
  func.func @transform_4(%arg0: i32) -> (i32, i32) {
    %c0_i32 = arith.constant 0 : i32
    %c0_i32_0 = arith.constant 0 : i32
    %c0_i32_1 = arith.constant 0 : i32
    return %c0_i32, %c0_i32_0 : i32, i32
  }
  func.func @transform_5(%arg0: i32) -> (i32, i32) {
    %c0_i32 = arith.constant 0 : i32
    %c0_i32_0 = arith.constant 0 : i32
    return %arg0, %c0_i32 : i32, i32
  }
}

</mosaic_0001>

<llo_original>
// kernel: tpu_custom_call.1
$region0: #{tpu_custom_call.1}
  #allocation0 [shape = 'u32[]', space=smem, size = 0x4, offset = 0x4, fixed_abs, tag = 'smem constant byte address 0x4 - core index']
  #allocation1 [shape = 'u32[144,128]{1,0:T(1,128)}', space=vmem, size = 0x12000, scoped, tag = 'internal scratch']
  %s0 = inlined_call_operand.vmem [shape: f32[64,20], index: 0, kind: input, shape index: {}]
  %s1 = inlined_call_operand.vmem [shape: f32[64,12], index: 1, kind: input, shape index: {}]
  %s2 = inlined_call_operand.vmem [shape: f32[20,128], index: 2, kind: input, shape index: {}]
  %s3 = inlined_call_operand.vmem [shape: f32[12,128], index: 3, kind: input, shape index: {}]
  %s4 = inlined_call_operand.vmem [shape: f32[1,128], index: 4, kind: input, shape index: {}]
  %s5 = inlined_call_operand.hbm [shape: f32[64,128], index: 5, kind: output, shape index: {}]
  %s6 = sld [smem:[#allocation0]]
  $region53: #{tpu_custom_call.1} parent=0
    _
  %s8 = ssub.s32 1, %s6
  %s9 = scalar_select 0, %s8, %s6
  $region1: #{tpu_custom_call.1} parent=0
    #allocation2 [shape = 'u8[16384]{0}', space=vmem, size = 0x4000, scoped, tag = 'output window, operand 0']
    #allocation3 [shape = 's32[2]{0}', space=sflag, size = 0x8, scoped, tag = 'scoped memory for tpu_custom_call.1']
    %10 = vsyncpa [#allocation3], 0
    %s11 = scalar_lea.sflag [#allocation3], 1
    %12 = vsyncpa %s11, 0
    loop: start=0, step=1, limit=6
    $region2: #{tpu_custom_call.1} parent=1 // loop_pre_header
      _
    $region3: #{tpu_custom_call.1} parent=1 // loop_header
      %s14 = sphi 0, %s18
      %p15 = scmp.ge.s32.totalorder %s14, 6
      %s24 = sphi 0, %s26
      %s27 = sphi 0, %s24
      %s28 = sphi 0, %s27
      %s44 = sphi 0, %s28
      %s50 = sphi 0, %s52
      %s53 = sphi 0, %s50
      %s54 = sphi 0, %s53
      %s70 = sphi 0, %s54
      %s74 = sphi 0, %s74
      %s76 = sphi 0, %s74
      %s77 = sphi 0, %s76
      %s91 = sphi 0, %s77
      %s95 = sphi 0, %s95
      %s97 = sphi 0, %s95
      %s98 = sphi 0, %s97
      %s112 = sphi 0, %s98
      %s116 = sphi 0, %s116
      %s118 = sphi 0, %s116
      %s119 = sphi 0, %s118
      %s133 = sphi 0, %s119
      %s139 = sphi 0, %s141
      %s142 = sphi 0, %s139
      %s143 = sphi 0, %s142
      %s159 = sphi 0, %s143
    $region4: #{tpu_custom_call.1} parent=1 // loop_header_branch
      %17 = sbr.rel (%p15) target = $region8
    $region5: #{tpu_custom_call.1} parent=1 // loop_body
      %s19 = ssub.s32 %s14, 1
      %s20 = ssub.s32 %s14, 2
      %s21 = sadd.s32 %s14, 1
      %s22 = ssub.s32 %s14, %s21
      %p23 = scmp.eq.s32.totalorder %s22, 0
      %s25 = sadd.s32 %s24, 1
      %s26 = scalar_select %p23, %s24, %s25
      %p29 = pneg %p23
      %p30 = scmp.eq.s32.totalorder %s14, 3
      %p31 = por %p29, %p30
      %p32 = scmp.ne.s32.totalorder %s24, %s27
      %p33 = scmp.eq.s32.totalorder %s14, 0
      %p34 = por %p32, %p33
      %p35 = scmp.ne.s32.totalorder %s24, %s27
      %p36 = scmp.eq.s32.totalorder %s19, 3
      %p37 = por %p35, %p36
      %p38 = scmp.ne.s32.totalorder %s27, %s28
      %p39 = scmp.eq.s32.totalorder %s19, 0
      %p40 = por %p38, %p39
      %p41 = scmp.ne.s32.totalorder %s27, %s28
      %p42 = scmp.eq.s32.totalorder %s20, 3
      %p43 = por %p41, %p42
      %p45 = scmp.ne.s32.totalorder %s28, %s44
      %p46 = scmp.eq.s32.totalorder %s20, 0
      %p47 = por %p45, %p46
      %s48 = ssub.s32 %s14, %s21
      %p49 = scmp.eq.s32.totalorder %s48, 0
      %s51 = sadd.s32 %s50, 1
      %s52 = scalar_select %p49, %s50, %s51
      %p55 = pneg %p49
      %p56 = scmp.eq.s32.totalorder %s14, 3
      %p57 = por %p55, %p56
      %p58 = scmp.ne.s32.totalorder %s50, %s53
      %p59 = scmp.eq.s32.totalorder %s14, 0
      %p60 = por %p58, %p59
      %p61 = scmp.ne.s32.totalorder %s50, %s53
      %p62 = scmp.eq.s32.totalorder %s19, 3
      %p63 = por %p61, %p62
      %p64 = scmp.ne.s32.totalorder %s53, %s54
      %p65 = scmp.eq.s32.totalorder %s19, 0
      %p66 = por %p64, %p65
      %p67 = scmp.ne.s32.totalorder %s53, %s54
      %p68 = scmp.eq.s32.totalorder %s20, 3
      %p69 = por %p67, %p68
      %p71 = scmp.ne.s32.totalorder %s54, %s70
      %p72 = scmp.eq.s32.totalorder %s20, 0
      %p73 = por %p71, %p72
      %s75 = sadd.s32 %s74, 1
      %p78 = scmp.eq.s32.totalorder %s14, 3
      %p79 = scmp.ne.s32.totalorder %s74, %s76
      %p80 = scmp.eq.s32.totalorder %s14, 0
      %p81 = por %p79, %p80
      %p82 = scmp.ne.s32.totalorder %s74, %s76
      %p83 = scmp.eq.s32.totalorder %s19, 3
      %p84 = por %p82, %p83
      %p85 = scmp.ne.s32.totalorder %s76, %s77
      %p86 = scmp.eq.s32.totalorder %s19, 0
      %p87 = por %p85, %p86
      %p88 = scmp.ne.s32.totalorder %s76, %s77
      %p89 = scmp.eq.s32.totalorder %s20, 3
      %p90 = por %p88, %p89
      %p92 = scmp.ne.s32.totalorder %s77, %s91
      %p93 = scmp.eq.s32.totalorder %s20, 0
      %p94 = por %p92, %p93
      %s96 = sadd.s32 %s95, 1
      %p99 = scmp.eq.s32.totalorder %s14, 3
      %p100 = scmp.ne.s32.totalorder %s95, %s97
      %p101 = scmp.eq.s32.totalorder %s14, 0
      %p102 = por %p100, %p101
      %p103 = scmp.ne.s32.totalorder %s95, %s97
      %p104 = scmp.eq.s32.totalorder %s19, 3
      %p105 = por %p103, %p104
      %p106 = scmp.ne.s32.totalorder %s97, %s98
      %p107 = scmp.eq.s32.totalorder %s19, 0
      %p108 = por %p106, %p107
      %p109 = scmp.ne.s32.totalorder %s97, %s98
      %p110 = scmp.eq.s32.totalorder %s20, 3
      %p111 = por %p109, %p110
      %p113 = scmp.ne.s32.totalorder %s98, %s112
      %p114 = scmp.eq.s32.totalorder %s20, 0
      %p115 = por %p113, %p114
      %s117 = sadd.s32 %s116, 1
      %p120 = scmp.eq.s32.totalorder %s14, 3
      %p121 = scmp.ne.s32.totalorder %s116, %s118
      %p122 = scmp.eq.s32.totalorder %s14, 0
      %p123 = por %p121, %p122
      %p124 = scmp.ne.s32.totalorder %s116, %s118
      %p125 = scmp.eq.s32.totalorder %s19, 3
      %p126 = por %p124, %p125
      %p127 = scmp.ne.s32.totalorder %s118, %s119
      %p128 = scmp.eq.s32.totalorder %s19, 0
      %p129 = por %p127, %p128
      %p130 = scmp.ne.s32.totalorder %s118, %s119
      %p131 = scmp.eq.s32.totalorder %s20, 3
      %p132 = por %p130, %p131
      %p134 = scmp.ne.s32.totalorder %s119, %s133
      %p135 = scmp.eq.s32.totalorder %s20, 0
      %p136 = por %p134, %p135
      %s137 = ssub.s32 %s14, %s21
      %p138 = scmp.eq.s32.totalorder %s137, 0
      %s140 = sadd.s32 %s139, 1
      %s141 = scalar_select %p138, %s139, %s140
      %p144 = pneg %p138
      %p145 = scmp.eq.s32.totalorder %s14, 3
      %p146 = por %p144, %p145
      %p147 = scmp.ne.s32.totalorder %s139, %s142
      %p148 = scmp.eq.s32.totalorder %s14, 0
      %p149 = por %p147, %p148
      %p150 = scmp.ne.s32.totalorder %s139, %s142
      %p151 = scmp.eq.s32.totalorder %s19, 3
      %p152 = por %p150, %p151
      %p153 = scmp.ne.s32.totalorder %s142, %s143
      %p154 = scmp.eq.s32.totalorder %s19, 0
      %p155 = por %p153, %p154
      %p156 = scmp.ne.s32.totalorder %s142, %s143
      %p157 = scmp.eq.s32.totalorder %s20, 3
      %p158 = por %p156, %p157
      %p160 = scmp.ne.s32.totalorder %s143, %s159
      %p161 = scmp.eq.s32.totalorder %s20, 0
      %p162 = por %p160, %p161
      %p163 = scmp.le.s32.totalorder 1, %s14
      %p164 = scmp.lt.s32.totalorder %s14, 5
      %p165 = pnand %p163, %p164
      %p166 = pneg %p165
      // Predicated region
      $region9: #{tpu_custom_call.1} parent=5 // pred_check
        _
      $region10: #{tpu_custom_call.1} parent=5 // pred_check_branch
        %168 = sbr.rel (%p165) target = $region12
      $region11: #{tpu_custom_call.1} parent=5 // pred_region
        %s169 = ssub.s32 %s14, 1
        // Predicated region
        $region13: #{tpu_custom_call.1} parent=11 // pred_check
          %p170 = pneg %p87
        $region14: #{tpu_custom_call.1} parent=11 // pred_check_branch
          %172 = sbr.rel (%p170) target = $region16
        $region15: #{tpu_custom_call.1} parent=11 // pred_region
          _
        $region16: #{tpu_custom_call.1} parent=11 // pred_fallthru
          _
        // Predicated region
        $region17: #{tpu_custom_call.1} parent=11 // pred_check
          %p173 = pneg %p108
        $region18: #{tpu_custom_call.1} parent=11 // pred_check_branch
          %175 = sbr.rel (%p173) target = $region20
        $region19: #{tpu_custom_call.1} parent=11 // pred_region
          _
        $region20: #{tpu_custom_call.1} parent=11 // pred_fallthru
          _
        // Predicated region
        $region21: #{tpu_custom_call.1} parent=11 // pred_check
          %p176 = pneg %p129
        $region22: #{tpu_custom_call.1} parent=11 // pred_check_branch
          %178 = sbr.rel (%p176) target = $region24
        $region23: #{tpu_custom_call.1} parent=11 // pred_region
          _
        $region24: #{tpu_custom_call.1} parent=11 // pred_fallthru
          _
      $region12: #{tpu_custom_call.1} parent=5 // pred_fallthru
        _
      %p179 = scmp.lt.s32.totalorder %s14, 4
      // Predicated region
      $region25: #{tpu_custom_call.1} parent=5 // pred_check
        %p180 = pneg %p179
      $region26: #{tpu_custom_call.1} parent=5 // pred_check_branch
        %182 = sbr.rel (%p180) target = $region28
      $region27: #{tpu_custom_call.1} parent=5 // pred_region
        // Predicated region
        $region29: #{tpu_custom_call.1} parent=27 // pred_check
          %p183 = pneg %p34
        $region30: #{tpu_custom_call.1} parent=27 // pred_check_branch
          %185 = sbr.rel (%p183) target = $region32
        $region31: #{tpu_custom_call.1} parent=27 // pred_region
          %s186 = smul.u32 2, %s14
          %p187 = scmp.lt.s32.totalorder %s186, 7
          %s188 = scalar_select %p187, %s186, 7
          %s189 = smul.addr %s188, 8
          %s190 = scalar_lea.vmem %s0, %s189
          %s191 = smul.u32 2, %s14
        $region32: #{tpu_custom_call.1} parent=27 // pred_fallthru
          _
        // Predicated region
        $region33: #{tpu_custom_call.1} parent=27 // pred_check
          %p192 = pneg %p60
        $region34: #{tpu_custom_call.1} parent=27 // pred_check_branch
          %194 = sbr.rel (%p192) target = $region36
        $region35: #{tpu_custom_call.1} parent=27 // pred_region
          %s195 = smul.u32 2, %s14
          %p196 = scmp.lt.s32.totalorder %s195, 7
          %s197 = scalar_select %p196, %s195, 7
          %s198 = smul.addr %s197, 8
          %s199 = scalar_lea.vmem %s1, %s198
          %s200 = smul.u32 2, %s14
        $region36: #{tpu_custom_call.1} parent=27 // pred_fallthru
          _
      $region28: #{tpu_custom_call.1} parent=5 // pred_fallthru
        _
      %p201 = scmp.le.s32.totalorder 1, %s14
      %p202 = scmp.lt.s32.totalorder %s14, 5
      %p203 = pnand %p201, %p202
      %p204 = pneg %p203
      // Predicated region
      $region37: #{tpu_custom_call.1} parent=5 // pred_check
        _
      $region38: #{tpu_custom_call.1} parent=5 // pred_check_branch
        %206 = sbr.rel (%p203) target = $region40
      $region39: #{tpu_custom_call.1} parent=5 // pred_region
        %s207 = ssub.s32 %s14, 1
        %s208 = smul.u32 2, %s19
        %p209 = scmp.lt.s32.totalorder %s208, 7
        %s210 = scalar_select %p209, %s208, 7
        %s211 = smul.addr %s210, 8
        %s212 = scalar_lea.vmem %s0, %s211
        %p213 = pneg %p40
        %p214 = pneg %p37
        %s215 = smul.u32 2, %s19
        %p216 = scmp.lt.s32.totalorder %s215, 7
        %s217 = scalar_select %p216, %s215, 7
        %s218 = smul.addr %s217, 8
        %s219 = scalar_lea.vmem %s1, %s218
        %p220 = pneg %p66
        %p221 = pneg %p63
        %p222 = pneg %p87
        %p223 = pneg %p84
        %p224 = pneg %p108
        %p225 = pneg %p105
        %p226 = pneg %p129
        %p227 = pneg %p126
        %p228 = pneg %p155
        %p229 = pneg %p152
        %s230 = sand.u32 %s142, 1
        %s231 = scalar_lea.sflag [#allocation3], %s230
        %s232 = sand.u32 %s142, 1
        %s233 = smul.addr %s232, 16
        %s234 = scalar_lea.vmem [#allocation2], %s233
        %s235 = smul.u32 2, %s19
        %p236 = scmp.lt.s32.totalorder %s235, 7
        %s237 = scalar_select %p236, %s235, 7
        %s238 = smul.addr %s237, 8
        %s239 = scalar_lea.vmem %s0, %s238
        %s240 = smul.u32 2, %s19
        %s241 = smul.u32 2, %s19
        %p242 = scmp.lt.s32.totalorder %s241, 7
        %s243 = scalar_select %p242, %s241, 7
        %s244 = smul.addr %s243, 8
        %s245 = scalar_lea.vmem %s1, %s244
        %s246 = smul.u32 2, %s19
        %s247 = smul.u32 2, %s19
        %v248 = vld [vmem:[%s239] sm:$0xff]
        %v249 = vld [vmem:[%s239 + $0x8] sm:$0xff]
        %v250 = vld [vmem:[%s2] sm:$0xff]
        %v251 = vld [vmem:[%s2 + $0x8] sm:$0xff]
        %v252 = vld [vmem:[%s2 + $0x10] sm:$0xf]
        %v253 = vld [vmem:[%s245] sm:$0xff]
        %v254 = vld [vmem:[%s245 + $0x8] sm:$0xff]
        %v255 = vld [vmem:[%s3] sm:$0xff]
        %v256 = vld [vmem:[%s3 + $0x8] sm:$0xf]
        %vm257 = vcmask 97280
        %v259 = vsel %vm257, %v253, 0
        %v262 = vsel %vm257, %v254, 0
        %vm264 = vcmask 1043456
        %v266 = vsel %vm264, %v256, 0
        %268 = vmatprep.subr.mxu0 0.0
        %269 = vmatpush1.msra.mxu0 0.0
        %270 = vmatprep.subr.mxu0 0.0
        %271 = vmatpush1.msra.mxu0 0.0
        %272 = vmatprep.subr.mxu0 0.0
        %273 = vmatpush1.msra.mxu0 0.0
        %274 = vmatprep.subr.mxu0 0.0
        %275 = vmatpush1.msra.mxu0 0.0
        %276 = vmatprep.subr.mxu0 0.0
        %277 = vmatpush1.msra.mxu0 0.0
        %278 = vmatprep.subr.mxu0 0.0
        %279 = vmatpush1.msra.mxu0 0.0
        %280 = vmatprep.subr.mxu0 0.0
        %281 = vmatpush1.msra.mxu0 0.0
        %282 = vmatprep.subr.mxu0 0.0
        %283 = vmatpush1.msra.mxu0 0.0
        %284 = vmatprep.subr.mxu0 0.0
        %285 = vmatpush1.msra.mxu0 0.0
        %286 = vmatprep.subr.mxu0 0.0
        %287 = vmatpush1.msra.mxu0 0.0
        %288 = vmatprep.subr.mxu0 0.0
        %289 = vmatpush1.msra.mxu0 0.0
        %290 = vmatprep.subr.mxu0 0.0
        %291 = vmatpush1.msra.mxu0 0.0
        %292 = vmatprep.subr.mxu0 0.0
        %293 = vmatpush1.msra.mxu0 0.0
        %294 = vmatprep.subr.mxu0 0.0
        %295 = vmatpush1.msra.mxu0 0.0
        %296 = vmatprep.subr.mxu0 0.0
        %297 = vmatpush1.msra.mxu0 %v266
        %298 = vmatprep.subr.mxu0 0.0
        %299 = vmatpush1.msra.mxu0 %v255
        %300 = vmatprep.subr.mxu0 0.0
        %301 = vmatpush2.msra.mxu0 0.0
        %302 = vmatprep.subr.mxu0 0.0
        %303 = vmatpush2.msra.mxu0 0.0
        %304 = vmatprep.subr.mxu0 0.0
        %305 = vmatpush2.msra.mxu0 0.0
        %306 = vmatprep.subr.mxu0 0.0
        %307 = vmatpush2.msra.mxu0 0.0
        %308 = vmatprep.subr.mxu0 0.0
        %309 = vmatpush2.msra.mxu0 0.0
        %310 = vmatprep.subr.mxu0 0.0
        %311 = vmatpush2.msra.mxu0 0.0
        %312 = vmatprep.subr.mxu0 0.0
        %313 = vmatpush2.msra.mxu0 0.0
        %314 = vmatprep.subr.mxu0 0.0
        %315 = vmatpush2.msra.mxu0 0.0
        %316 = vmatprep.subr.mxu0 0.0
        %317 = vmatpush2.msra.mxu0 0.0
        %318 = vmatprep.subr.mxu0 0.0
        %319 = vmatpush2.msra.mxu0 0.0
        %320 = vmatprep.subr.mxu0 0.0
        %321 = vmatpush2.msra.mxu0 0.0
        %322 = vmatprep.subr.mxu0 0.0
        %323 = vmatpush2.msra.mxu0 0.0
        %324 = vmatprep.subr.mxu0 0.0
        %325 = vmatpush2.msra.mxu0 0.0
        %326 = vmatprep.subr.mxu0 0.0
        %327 = vmatpush2.msra.mxu0 0.0
        %328 = vmatprep.subr.mxu0 0.0
        %329 = vmatpush2.msra.mxu0 0.0
        %330 = vmatprep.subr.mxu0 0.0
        %331 = vmatpush2.msra.mxu0 0.0
        %332 = vmatprep.mubr.f32.mxu0 0.0
        %333 = vmatmul.mubr.f32.gmra.mxu0 %v259
        %v334 = vpop.f32.mrf.mxu0
        %v335 = vadd.f32 0.0, %v334
        %v336 = vpop.f32.mrf.mxu0
        %337 = vmatprep.mubr.f32.mxu0 0.0
        %338 = vmatmul.mubr.f32.gmra.mxu0 %v262
        %v339 = vpop.f32.mrf.mxu0
        %v340 = vadd.f32 0.0, %v339
        %v341 = vpop.f32.mrf.mxu0
        %342 = vdwg.mxu0
        %vm343 = vcmask 162816
        %v345 = vsel %vm343, %v248, 0
        %v348 = vsel %vm343, %v249, 0
        %v351 = vsel %vm264, %v252, 0
        %353 = vmatprep.subr.mxu0 0.0
        %354 = vmatpush1.msra.mxu0 0.0
        %355 = vmatprep.subr.mxu0 0.0
        %356 = vmatpush1.msra.mxu0 0.0
        %357 = vmatprep.subr.mxu0 0.0
        %358 = vmatpush1.msra.mxu0 0.0
        %359 = vmatprep.subr.mxu0 0.0
        %360 = vmatpush1.msra.mxu0 0.0
        %361 = vmatprep.subr.mxu0 0.0
        %362 = vmatpush1.msra.mxu0 0.0
        %363 = vmatprep.subr.mxu0 0.0
        %364 = vmatpush1.msra.mxu0 0.0
        %365 = vmatprep.subr.mxu0 0.0
        %366 = vmatpush1.msra.mxu0 0.0
        %367 = vmatprep.subr.mxu0 0.0
        %368 = vmatpush1.msra.mxu0 0.0
        %369 = vmatprep.subr.mxu0 0.0
        %370 = vmatpush1.msra.mxu0 0.0
        %371 = vmatprep.subr.mxu0 0.0
        %372 = vmatpush1.msra.mxu0 0.0
        %373 = vmatprep.subr.mxu0 0.0
        %374 = vmatpush1.msra.mxu0 0.0
        %375 = vmatprep.subr.mxu0 0.0
        %376 = vmatpush1.msra.mxu0 0.0
        %377 = vmatprep.subr.mxu0 0.0
        %378 = vmatpush1.msra.mxu0 0.0
        %379 = vmatprep.subr.mxu0 0.0
        %380 = vmatpush1.msra.mxu0 %v351
        %381 = vmatprep.subr.mxu0 0.0
        %382 = vmatpush1.msra.mxu0 %v251
        %383 = vmatprep.subr.mxu0 0.0
        %384 = vmatpush1.msra.mxu0 %v250
        %385 = vmatprep.subr.mxu0 0.0
        %386 = vmatpush2.msra.mxu0 0.0
        %387 = vmatprep.subr.mxu0 0.0
        %388 = vmatpush2.msra.mxu0 0.0
        %389 = vmatprep.subr.mxu0 0.0
        %390 = vmatpush2.msra.mxu0 0.0
        %391 = vmatprep.subr.mxu0 0.0
        %392 = vmatpush2.msra.mxu0 0.0
        %393 = vmatprep.subr.mxu0 0.0
        %394 = vmatpush2.msra.mxu0 0.0
        %395 = vmatprep.subr.mxu0 0.0
        %396 = vmatpush2.msra.mxu0 0.0
        %397 = vmatprep.subr.mxu0 0.0
        %398 = vmatpush2.msra.mxu0 0.0
        %399 = vmatprep.subr.mxu0 0.0
        %400 = vmatpush2.msra.mxu0 0.0
        %401 = vmatprep.subr.mxu0 0.0
        %402 = vmatpush2.msra.mxu0 0.0
        %403 = vmatprep.subr.mxu0 0.0
        %404 = vmatpush2.msra.mxu0 0.0
        %405 = vmatprep.subr.mxu0 0.0
        %406 = vmatpush2.msra.mxu0 0.0
        %407 = vmatprep.subr.mxu0 0.0
        %408 = vmatpush2.msra.mxu0 0.0
        %409 = vmatprep.subr.mxu0 0.0
        %410 = vmatpush2.msra.mxu0 0.0
        %411 = vmatprep.subr.mxu0 0.0
        %412 = vmatpush2.msra.mxu0 0.0
        %413 = vmatprep.subr.mxu0 0.0
        %414 = vmatpush2.msra.mxu0 0.0
        %415 = vmatprep.subr.mxu0 0.0
        %416 = vmatpush2.msra.mxu0 0.0
        %417 = vmatprep.mubr.f32.mxu0 0.0
        %418 = vmatmul.mubr.f32.gmra.mxu0 %v345
        %v419 = vpop.f32.mrf.mxu0
        %v420 = vadd.f32 %v335, %v419
        %v421 = vpop.f32.mrf.mxu0
        %422 = vmatprep.mubr.f32.mxu0 0.0
        %423 = vmatmul.mubr.f32.gmra.mxu0 %v348
        %v424 = vpop.f32.mrf.mxu0
        %v425 = vadd.f32 %v340, %v424
        %v426 = vpop.f32.mrf.mxu0
        %427 = vdwg.mxu0
        %v428 = vld [vmem:[%s4] sm:$0x1]
        %v430 = vlaneseq
        %v431 = vshrl.u32 %v430, 7
        %v432 = vsub.s32 0, %v431
        %v433 = vrot.slane %v428, %v432
        %v435 = vadd.f32 %v420, %v433
        %v436 = vadd.f32 %v425, %v433
        %437 = vst [vmem:[%s234] sm:$0xff] %v435
        %438 = vst [vmem:[%s234 + $0x8] sm:$0xff] %v436
        %s439 = sand.u32 %s142, 1
        %s440 = scalar_lea.sflag [#allocation3], %s439
        %s441 = sand.u32 %s142, 1
        %s442 = smul.addr %s441, 16
        %s443 = scalar_lea.vmem [#allocation2], %s442
        // Predicated region
        $region41: #{tpu_custom_call.1} parent=39 // pred_check
          %p444 = pneg %p152
        $region42: #{tpu_custom_call.1} parent=39 // pred_check_branch
          %446 = sbr.rel (%p444) target = $region44
        $region43: #{tpu_custom_call.1} parent=39 // pred_region
          %s447 = smul.u32 2, %s19
          %s449 = ssub.s32 256, 256
          %450 = vsyncadd %s440, %s449
          %s451 = smul.addr %s447, 128
          %s452 = scalar_lea.hbm %s5, %s451
          %s453 = sshll.u32 %s443, 4
          %s454 = int_to_ptr.vmem [resolvable:$true] %s453
          %459 = dma.vmem_to_hbm [thread:$0]  %s454, 256, %s452, %s440, 128, 128, 8
        $region44: #{tpu_custom_call.1} parent=39 // pred_fallthru
          _
      $region40: #{tpu_custom_call.1} parent=5 // pred_fallthru
        _
      %p460 = scmp.le.s32.totalorder 2, %s14
      // Predicated region
      $region45: #{tpu_custom_call.1} parent=5 // pred_check
        %p461 = pneg %p460
      $region46: #{tpu_custom_call.1} parent=5 // pred_check_branch
        %463 = sbr.rel (%p461) target = $region48
      $region47: #{tpu_custom_call.1} parent=5 // pred_region
        %s464 = ssub.s32 %s14, 2
        // Predicated region
        $region49: #{tpu_custom_call.1} parent=47 // pred_check
          %p465 = pneg %p158
        $region50: #{tpu_custom_call.1} parent=47 // pred_check_branch
          %467 = sbr.rel (%p465) target = $region52
        $region51: #{tpu_custom_call.1} parent=47 // pred_region
          %s468 = sand.u32 %s143, 1
          %s469 = scalar_lea.sflag [#allocation3], %s468
          %s470 = sand.u32 %s143, 1
          %s471 = smul.addr %s470, 16
          %s472 = scalar_lea.vmem [#allocation2], %s471
          %473 = dma.done %s469, 256
        $region52: #{tpu_custom_call.1} parent=47 // pred_fallthru
          _
      $region48: #{tpu_custom_call.1} parent=5 // pred_fallthru
        _
    $region6: #{tpu_custom_call.1} parent=1 // loop_footer
      %s18 = sadd.s32 1, %s14
    $region7: #{tpu_custom_call.1} parent=1 // loop_footer_branch
      %13 = sbr.rel target = $region3
    $region8: #{tpu_custom_call.1} parent=1 // loop_exit
      _
    %474 = vsyncpa [#allocation3], 1
    %s475 = scalar_lea.sflag [#allocation3], 1
    %476 = vsyncpa %s475, 1

</llo_original>
